<compile_context>
chip_gen: v5e
topology: v5e:2x2
jax: 0.10.0
libtpu: 0.0.40
codegen_flags: <defaults>
</compile_context>

<pallas_src>
import numpy as np
import jax
import jax.numpy as jnp
from jax import lax
from jax.experimental import pallas as pl
from jax.experimental.pallas import tpu as pltpu


# ---------------------------------------------------------------------------
# Interpolation matrices (host-side, tiny)
# ---------------------------------------------------------------------------
def _interp_matrix(n_in: int, n_out: int, dtype=jnp.float32):
    """Row-interpolation matrix W (n_out, n_in) for bilinear, align_corners=True."""
    if n_in == 1:
        return jnp.ones((n_out, 1), dtype=dtype)
    idx = jnp.arange(n_out, dtype=jnp.float32)
    if n_out == 1:
        src = jnp.zeros((1,), jnp.float32)
    else:
        src = idx * (n_in - 1) / (n_out - 1)
    lo = jnp.clip(jnp.floor(src).astype(jnp.int32), 0, n_in - 2)
    frac = src - lo.astype(jnp.float32)
    oh_lo = jax.nn.one_hot(lo, n_in, dtype=jnp.float32)
    oh_hi = jax.nn.one_hot(lo + 1, n_in, dtype=jnp.float32)
    w = (1.0 - frac)[:, None] * oh_lo + frac[:, None] * oh_hi
    return w.astype(dtype)


# ---------------------------------------------------------------------------
# VMEM sizing helpers (generation aware)
# ---------------------------------------------------------------------------
def _physical_vmem_bytes() -> int:
    """Per-core physical VMEM; conservative v7x fallback if the query fails."""
    try:
        cap = int(pltpu.get_tpu_info().vmem_capacity_bytes)
        if cap > 0:
            return cap
    except Exception:
        pass
    return 64 << 20  # v7x per-TC VMEM (most restrictive generation)


def _vmem_block_bytes(d, H, W, Hout, Wout, io_isz, c_isz, direct):
    """Estimated VMEM for one grid step with tile_bc=d (double-buffered I/O,
    single-buffered compute intermediates, resident weight slabs)."""
    x_blk = d * H * W * io_isz
    o_blk = d * Hout * Wout * io_isz
    inter = d * (H * W * c_isz            # cast copy of x (worst case)
                 + H * Wout * 4           # f32 result of first matmul
                 + 2 * H * Wout * c_isz   # cast + relayout copies of tmp
                 + Hout * Wout * 4)       # f32 result of second matmul
    if direct:
        inter += d * Hout * H * c_isz     # broadcast wy for the batched matmul
    weights = 2 * (Hout * H + W * Wout) * c_isz
    return 2 * (x_blk + o_blk) + inter + weights


def _pick_tile_bc(BC, H, W, Hout, Wout, io_isz, c_isz, direct, budget):
    """Pick tile_bc: must fit the VMEM budget; prefer lane width % 128 == 0
    (fused path), >= 2 grid steps, an even step count (v7x 2-TC), then size."""
    best_key, best_d = None, 1
    for d in range(1, BC + 1):
        if BC % d:
            continue
        if d > 1 and _vmem_block_bytes(d, H, W, Hout, Wout, io_isz, c_isz, direct) > budget:
            continue
        n = BC // d
        lane_w = Wout if direct else d * Wout
        key = (lane_w % 128 == 0,     # unmasked vst
               lane_w >= 128,         # at least one full lane vreg
               n >= 2,                # some pipelining / megacore work
               n >= 2 and n % 2 == 0, # even split across v7x's 2 TCs
               d)                     # amortise per-step overhead
        if best_key is None or key > best_key:
            best_key, best_d = key, d
    return best_d


# ---------------------------------------------------------------------------
# Kernels
# ---------------------------------------------------------------------------
def _upsample_kernel_direct(x_ref, wy_ref, wxt_ref, o_ref):
    # x_ref:   (tbc, H, W)
    # wy_ref:  (Hout, H)
    # wxt_ref: (W, Wout)
    # o_ref:   (tbc, Hout, Wout)   -- final layout, lane-dense when Wout >= 128
    tbc, h, w = x_ref.shape
    hout = wy_ref.shape[0]
    wout = wxt_ref.shape[1]
    cdt = wy_ref.dtype

    # Column interpolation: one big MXU matmul over all planes at once.
    x2d = x_ref[...].astype(cdt).reshape(tbc * h, w)
    tmp = jnp.dot(x2d, wxt_ref[...], preferred_element_type=jnp.float32)   # (tbc*H, Wout)
    tmp3 = tmp.astype(cdt).reshape(tbc, h, wout)                           # (tbc, H, Wout)

    # Row interpolation as a batched matmul -> result already in output layout.
    wy_b = jnp.broadcast_to(wy_ref[...][None], (tbc, hout, h))
    out = lax.dot_general(wy_b, tmp3,
                          dimension_numbers=(((2,), (1,)), ((0,), (0,))),
                          preferred_element_type=jnp.float32)              # (tbc, Hout, Wout)
    o_ref[...] = out.astype(o_ref.dtype)


def _upsample_kernel_fused(x_ref, wy_ref, wxt_ref, o_ref):
    # x_ref:   (tbc, H, W)
    # wy_ref:  (Hout, H)
    # wxt_ref: (W, Wout)
    # o_ref:   (1, Hout, tbc*Wout)   -- planes fused into lanes for dense stores
    tbc, h, w = x_ref.shape
    wout = wxt_ref.shape[1]
    cdt = wy_ref.dtype

    x2d = x_ref[...].astype(cdt).reshape(tbc * h, w)
    tmp = jnp.dot(x2d, wxt_ref[...], preferred_element_type=jnp.float32)   # (tbc*H, Wout)

    # Cast BEFORE the sublane->lane relayout (halves relayout bytes on bf16).
    tmp = (tmp.astype(cdt)
              .reshape(tbc, h, wout)
              .transpose(1, 0, 2)
              .reshape(h, tbc * wout))                                     # (H, tbc*Wout)
    out = jnp.dot(wy_ref[...], tmp, preferred_element_type=jnp.float32)    # (Hout, tbc*Wout)
    o_ref[0] = out.astype(o_ref.dtype)


# ---------------------------------------------------------------------------
# Wrapper
# ---------------------------------------------------------------------------
def upsample_bilinear(x, scale_factor: int = 2):
    """Bilinear upsample (align_corners=True) of NCHW input x by `scale_factor`."""
    B, C, H, W = x.shape
    Hout, Wout = H * scale_factor, W * scale_factor
    BC = B * C

    compute_dtype = jnp.bfloat16 if x.dtype == jnp.bfloat16 else jnp.float32
    wy = _interp_matrix(H, Hout, dtype=compute_dtype)       # (Hout, H)
    wxt = _interp_matrix(W, Wout, dtype=compute_dtype).T    # (W, Wout)

    io_isz = jnp.dtype(x.dtype).itemsize
    c_isz = jnp.dtype(compute_dtype).itemsize

    physical = _physical_vmem_bytes()
    budget = physical // 2                       # ~32 MiB on v7x, ~64 MiB on v5e/v6e
    cap = max(physical - (16 << 20), 32 << 20)   # never request more than physical-headroom

    out_bytes = BC * Hout * Wout * io_isz
    # Direct (unfused) layout: already lane-dense when Wout >= 128; for large
    # outputs the wrapper un-fuse transpose (an extra HBM pass) would dominate,
    # so prefer direct there too even with masked stores.
    use_direct = (Wout >= 128) or (out_bytes >= (8 << 20))

    tile_bc = _pick_tile_bc(BC, H, W, Hout, Wout, io_isz, c_isz, use_direct, budget)
    n_tiles = BC // tile_bc
    x_flat = x.reshape(BC, H, W)

    est = _vmem_block_bytes(tile_bc, H, W, Hout, Wout, io_isz, c_isz, use_direct)
    vmem_limit = int(max(min(est + (4 << 20), cap), 16 << 20))

    compiler_params = pltpu.CompilerParams(
        dimension_semantics=("parallel",),
        vmem_limit_bytes=vmem_limit,
    )
    in_specs = [
        pl.BlockSpec((tile_bc, H, W), lambda i: (i, 0, 0)),
        pl.BlockSpec((Hout, H), lambda i: (0, 0)),    # resident, no re-DMA
        pl.BlockSpec((W, Wout), lambda i: (0, 0)),    # resident, no re-DMA
    ]

    if use_direct:
        out_flat = pl.pallas_call(
            _upsample_kernel_direct,
            out_shape=jax.ShapeDtypeStruct((BC, Hout, Wout), x.dtype),
            grid_spec=pltpu.PrefetchScalarGridSpec(
                num_scalar_prefetch=0,
                grid=(n_tiles,),
                in_specs=in_specs,
                out_specs=pl.BlockSpec((tile_bc, Hout, Wout), lambda i: (i, 0, 0)),
            ),
            compiler_params=compiler_params,
        )(x_flat, wy, wxt)
        return out_flat.reshape(B, C, Hout, Wout)   # free reshape, no transpose

    out_fused = pl.pallas_call(
        _upsample_kernel_fused,
        out_shape=jax.ShapeDtypeStruct((n_tiles, Hout, tile_bc * Wout), x.dtype),
        grid_spec=pltpu.PrefetchScalarGridSpec(
            num_scalar_prefetch=0,
            grid=(n_tiles,),
            in_specs=in_specs,
            out_specs=pl.BlockSpec((1, Hout, tile_bc * Wout), lambda i: (i, 0, 0)),
        ),
        compiler_params=compiler_params,
    )(x_flat, wy, wxt)

    # Un-fuse the lane dimension (small outputs only): wrapper-side layout plumbing.
    out = (out_fused
           .reshape(n_tiles, Hout, tile_bc, Wout)
           .transpose(0, 2, 1, 3)
           .reshape(B, C, Hout, Wout))
    return out


# ---------------------------------------------------------------------------
# Reference + tests
# ---------------------------------------------------------------------------
def _reference_bilinear_np(x, scale_factor=2):
    """Direct per-pixel bilinear (align_corners=True) reference in numpy."""
    B, C, H, W = x.shape
    Hout, Wout = H * scale_factor, W * scale_factor
    ys = np.arange(Hout) * (H - 1) / (Hout - 1) if Hout > 1 else np.zeros(1)
    xs = np.arange(Wout) * (W - 1) / (Wout - 1) if Wout > 1 else np.zeros(1)
    y0 = np.clip(np.floor(ys).astype(np.int32), 0, H - 2)
    x0 = np.clip(np.floor(xs).astype(np.int32), 0, W - 2)
    fy = (ys - y0)[None, None, :, None]
    fx = (xs - x0)[None, None, None, :]
    a = x[:, :, y0][:, :, :, x0]
    b = x[:, :, y0][:, :, :, x0 + 1]
    c = x[:, :, y0 + 1][:, :, :, x0]
    d = x[:, :, y0 + 1][:, :, :, x0 + 1]
    return (a * (1 - fy) * (1 - fx) + b * (1 - fy) * fx
            + c * fy * (1 - fx) + d * fy * fx)


if __name__ == "__main__":
    key = jax.random.PRNGKey(0)

    # Test 1: module shape (fused small-Wout path), f32.
    B, C, H, W = 2, 4, 16, 16
    x = jax.random.normal(key, (B, C, H, W), dtype=jnp.float32)
    out = jax.block_until_ready(upsample_bilinear(x, scale_factor=2))
    assert out.shape == (B, C, 2 * H, 2 * W), out.shape
    ref = _reference_bilinear_np(np.asarray(x), scale_factor=2)
    np.testing.assert_allclose(np.asarray(out), ref, rtol=1e-5, atol=1e-5)

    # Test 2: wide input exercising the direct lane-dense path (Wout = 128), f32.
    x2 = jax.random.normal(jax.random.PRNGKey(1), (2, 4, 8, 64), dtype=jnp.float32)
    out2 = jax.block_until_ready(upsample_bilinear(x2, scale_factor=2))
    assert out2.shape == (2, 4, 16, 128), out2.shape
    ref2 = _reference_bilinear_np(np.asarray(x2), scale_factor=2)
    np.testing.assert_allclose(np.asarray(out2), ref2, rtol=1e-5, atol=1e-5)

    # Test 3: bf16 I/O (bf16 MXU operands, f32 accumulation).
    xb = x.astype(jnp.bfloat16)
    outb = jax.block_until_ready(upsample_bilinear(xb, scale_factor=2))
    assert outb.shape == (B, C, 2 * H, 2 * W), outb.shape
    refb = _reference_bilinear_np(np.asarray(xb, dtype=np.float32), scale_factor=2)
    np.testing.assert_allclose(np.asarray(outb, dtype=np.float32), refb,
                               rtol=5e-2, atol=5e-2)

    print("KERNEL_OK")
</pallas_src>

<mosaic_0001>
module attributes {stable_mosaic.version = 11 : i64} {
  func.func @_upsample_kernel_fused(%arg0: i32, %arg1: memref<4x16x16xf32, #tpu.memory_space<vmem>>, %arg2: memref<32x16xf32, #tpu.memory_space<vmem>>, %arg3: memref<16x32xf32, #tpu.memory_space<vmem>>, %arg4: memref<1x32x128xf32, #tpu.memory_space<vmem>>) attributes {dimension_semantics = [#tpu.dimension_semantics<parallel>], iteration_bounds = array<i64: 2>, scalar_prefetch = 0 : i64, scratch_operands = 0 : i64, tpu.core_type = #tpu.core_type<tc>, window_params = [{transform_indices = @transform_0, window_bounds = array<i64: 4, 16, 16>}, {pipeline_mode = #tpu.pipeline_mode<synchronous>, transform_indices = @transform_1, window_bounds = array<i64: 32, 16>}, {pipeline_mode = #tpu.pipeline_mode<synchronous>, transform_indices = @transform_2, window_bounds = array<i64: 16, 32>}, {transform_indices = @transform_3, window_bounds = array<i64: 1, 32, 128>}]} {
    %c0 = arith.constant 0 : index
    %c0_0 = arith.constant 0 : index
    %c0_1 = arith.constant 0 : index
    %0 = vector.load %arg1[%c0, %c0_0, %c0_1] : memref<4x16x16xf32, #tpu.memory_space<vmem>>, vector<4x16x16xf32>
    %1 = vector.shape_cast %0 : vector<4x16x16xf32> to vector<64x16xf32>
    %c0_2 = arith.constant 0 : index
    %c0_3 = arith.constant 0 : index
    %2 = vector.load %arg3[%c0_2, %c0_3] : memref<16x32xf32, #tpu.memory_space<vmem>>, vector<16x32xf32>
    %cst = arith.constant dense<0.000000e+00> : vector<64x32xf32>
    %3 = tpu.matmul %1, %2, %cst {dimension_numbers = #tpu.dot_dimension_numbers<[1], [0], [0], [1], [0, 0, 1, 1], [], []>} : vector<64x16xf32>, vector<16x32xf32>, vector<64x32xf32> -> vector<64x32xf32>
    %4 = vector.shape_cast %3 : vector<64x32xf32> to vector<4x16x32xf32>
    %5 = tpu.transpose %4, [1, 0, 2] : vector<4x16x32xf32> -> vector<16x4x32xf32>
    %6 = vector.shape_cast %5 : vector<16x4x32xf32> to vector<16x128xf32>
    %c0_4 = arith.constant 0 : index
    %c0_5 = arith.constant 0 : index
    %7 = vector.load %arg2[%c0_4, %c0_5] : memref<32x16xf32, #tpu.memory_space<vmem>>, vector<32x16xf32>
    %cst_6 = arith.constant dense<0.000000e+00> : vector<32x128xf32>
    %8 = tpu.matmul %7, %6, %cst_6 {dimension_numbers = #tpu.dot_dimension_numbers<[1], [0], [0], [1], [0, 0, 1, 1], [], []>} : vector<32x16xf32>, vector<16x128xf32>, vector<32x128xf32> -> vector<32x128xf32>
    %c0_7 = arith.constant 0 : index
    %c0_8 = arith.constant 0 : index
    %c0_9 = arith.constant 0 : index
    %9 = vector.load %arg4[%c0_7, %c0_8, %c0_9] : memref<1x32x128xf32, #tpu.memory_space<vmem>>, vector<1x32x128xf32>
    %10 = vector.shape_cast %9 : vector<1x32x128xf32> to vector<32x128xf32>
    %11 = vector.shape_cast %8 : vector<32x128xf32> to vector<1x32x128xf32>
    tpu.vector_store %arg4[%c0_7, %c0_8, %c0_9], %11 {strides = array<i32>} : memref<1x32x128xf32, #tpu.memory_space<vmem>>, vector<1x32x128xf32>,
    return
  }
  func.func @transform_0(%arg0: i32) -> (i32, i32, i32) {
    %c0_i32 = arith.constant 0 : i32
    %c0_i32_0 = arith.constant 0 : i32
    %c0_i32_1 = arith.constant 0 : i32
    return %arg0, %c0_i32, %c0_i32_0 : i32, i32, i32
  }
  func.func @transform_1(%arg0: i32) -> (i32, i32) {
    %c0_i32 = arith.constant 0 : i32
    %c0_i32_0 = arith.constant 0 : i32
    %c0_i32_1 = arith.constant 0 : i32
    return %c0_i32, %c0_i32_0 : i32, i32
  }
  func.func @transform_2(%arg0: i32) -> (i32, i32) {
    %c0_i32 = arith.constant 0 : i32
    %c0_i32_0 = arith.constant 0 : i32
    %c0_i32_1 = arith.constant 0 : i32
    return %c0_i32, %c0_i32_0 : i32, i32
  }
  func.func @transform_3(%arg0: i32) -> (i32, i32, i32) {
    %c0_i32 = arith.constant 0 : i32
    %c0_i32_0 = arith.constant 0 : i32
    %c0_i32_1 = arith.constant 0 : i32
    return %arg0, %c0_i32, %c0_i32_0 : i32, i32, i32
  }
}

</mosaic_0001>

<llo_original>
// kernel: tpu_custom_call.1
$region0: #{tpu_custom_call.1}
  #allocation0 [shape = 'u32[]', space=smem, size = 0x4, offset = 0x4, fixed_abs, tag = 'smem constant byte address 0x4 - core index']
  #allocation1 [shape = 'u32[72,128]{1,0:T(1,128)}', space=vmem, size = 0x9000, scoped, tag = 'internal scratch']
  %s0 = inlined_call_operand.hbm [shape: f32[8,16,16], index: 0, kind: input, shape index: {}]
  %s1 = inlined_call_operand.vmem [shape: f32[32,16], index: 1, kind: input, shape index: {}]
  %s2 = inlined_call_operand.vmem [shape: f32[16,32], index: 2, kind: input, shape index: {}]
  %s3 = inlined_call_operand.hbm [shape: f32[2,32,128], index: 3, kind: output, shape index: {}]
  %s4 = sld [smem:[#allocation0]]
  $region49: #{tpu_custom_call.1} parent=0
    _
  %s6 = ssub.s32 1, %s4
  %s7 = scalar_select 0, %s6, %s4
  $region1: #{tpu_custom_call.1} parent=0
    #allocation2 [shape = 'u8[65536]{0}', space=vmem, size = 0x10000, scoped, tag = 'input window, operand 0']
    #allocation3 [shape = 's32[2]{0}', space=sflag, size = 0x8, scoped, tag = 'scoped memory for tpu_custom_call.1']
    #allocation4 [shape = 's32[2]{0}', space=sflag, size = 0x8, scoped, tag = 'scoped memory for tpu_custom_call.1']
    #allocation5 [shape = 'u8[32768]{0}', space=vmem, size = 0x8000, scoped, tag = 'output window, operand 0']
    %8 = vsyncpa [#allocation3], 0
    %s9 = scalar_lea.sflag [#allocation3], 1
    %10 = vsyncpa %s9, 0
    %11 = vsyncpa [#allocation4], 0
    %s12 = scalar_lea.sflag [#allocation4], 1
    %13 = vsyncpa %s12, 0
    loop: start=0, step=1, limit=4
    $region2: #{tpu_custom_call.1} parent=1 // loop_pre_header
      _
    $region3: #{tpu_custom_call.1} parent=1 // loop_header
      %s15 = sphi 0, %s19
      %p16 = scmp.ge.s32.totalorder %s15, 4
      %s25 = sphi 0, %s27
      %s28 = sphi 0, %s25
      %s29 = sphi 0, %s28
      %s45 = sphi 0, %s29
      %s49 = sphi 0, %s49
      %s51 = sphi 0, %s49
      %s52 = sphi 0, %s51
      %s66 = sphi 0, %s52
      %s70 = sphi 0, %s70
      %s72 = sphi 0, %s70
      %s73 = sphi 0, %s72
      %s87 = sphi 0, %s73
      %s93 = sphi 0, %s95
      %s96 = sphi 0, %s93
      %s97 = sphi 0, %s96
      %s113 = sphi 0, %s97
    $region4: #{tpu_custom_call.1} parent=1 // loop_header_branch
      %18 = sbr.rel (%p16) target = $region8
    $region5: #{tpu_custom_call.1} parent=1 // loop_body
      %s20 = ssub.s32 %s15, 1
      %s21 = ssub.s32 %s15, 2
      %s22 = sadd.s32 %s15, 1
      %s23 = ssub.s32 %s15, %s22
      %p24 = scmp.eq.s32.totalorder %s23, 0
      %s26 = sadd.s32 %s25, 1
      %s27 = scalar_select %p24, %s25, %s26
      %p30 = pneg %p24
      %p31 = scmp.eq.s32.totalorder %s15, 1
      %p32 = por %p30, %p31
      %p33 = scmp.ne.s32.totalorder %s25, %s28
      %p34 = scmp.eq.s32.totalorder %s15, 0
      %p35 = por %p33, %p34
      %p36 = scmp.ne.s32.totalorder %s25, %s28
      %p37 = scmp.eq.s32.totalorder %s20, 1
      %p38 = por %p36, %p37
      %p39 = scmp.ne.s32.totalorder %s28, %s29
      %p40 = scmp.eq.s32.totalorder %s20, 0
      %p41 = por %p39, %p40
      %p42 = scmp.ne.s32.totalorder %s28, %s29
      %p43 = scmp.eq.s32.totalorder %s21, 1
      %p44 = por %p42, %p43
      %p46 = scmp.ne.s32.totalorder %s29, %s45
      %p47 = scmp.eq.s32.totalorder %s21, 0
      %p48 = por %p46, %p47
      %s50 = sadd.s32 %s49, 1
      %p53 = scmp.eq.s32.totalorder %s15, 1
      %p54 = scmp.ne.s32.totalorder %s49, %s51
      %p55 = scmp.eq.s32.totalorder %s15, 0
      %p56 = por %p54, %p55
      %p57 = scmp.ne.s32.totalorder %s49, %s51
      %p58 = scmp.eq.s32.totalorder %s20, 1
      %p59 = por %p57, %p58
      %p60 = scmp.ne.s32.totalorder %s51, %s52
      %p61 = scmp.eq.s32.totalorder %s20, 0
      %p62 = por %p60, %p61
      %p63 = scmp.ne.s32.totalorder %s51, %s52
      %p64 = scmp.eq.s32.totalorder %s21, 1
      %p65 = por %p63, %p64
      %p67 = scmp.ne.s32.totalorder %s52, %s66
      %p68 = scmp.eq.s32.totalorder %s21, 0
      %p69 = por %p67, %p68
      %s71 = sadd.s32 %s70, 1
      %p74 = scmp.eq.s32.totalorder %s15, 1
      %p75 = scmp.ne.s32.totalorder %s70, %s72
      %p76 = scmp.eq.s32.totalorder %s15, 0
      %p77 = por %p75, %p76
      %p78 = scmp.ne.s32.totalorder %s70, %s72
      %p79 = scmp.eq.s32.totalorder %s20, 1
      %p80 = por %p78, %p79
      %p81 = scmp.ne.s32.totalorder %s72, %s73
      %p82 = scmp.eq.s32.totalorder %s20, 0
      %p83 = por %p81, %p82
      %p84 = scmp.ne.s32.totalorder %s72, %s73
      %p85 = scmp.eq.s32.totalorder %s21, 1
      %p86 = por %p84, %p85
      %p88 = scmp.ne.s32.totalorder %s73, %s87
      %p89 = scmp.eq.s32.totalorder %s21, 0
      %p90 = por %p88, %p89
      %s91 = ssub.s32 %s15, %s22
      %p92 = scmp.eq.s32.totalorder %s91, 0
      %s94 = sadd.s32 %s93, 1
      %s95 = scalar_select %p92, %s93, %s94
      %p98 = pneg %p92
      %p99 = scmp.eq.s32.totalorder %s15, 1
      %p100 = por %p98, %p99
      %p101 = scmp.ne.s32.totalorder %s93, %s96
      %p102 = scmp.eq.s32.totalorder %s15, 0
      %p103 = por %p101, %p102
      %p104 = scmp.ne.s32.totalorder %s93, %s96
      %p105 = scmp.eq.s32.totalorder %s20, 1
      %p106 = por %p104, %p105
      %p107 = scmp.ne.s32.totalorder %s96, %s97
      %p108 = scmp.eq.s32.totalorder %s20, 0
      %p109 = por %p107, %p108
      %p110 = scmp.ne.s32.totalorder %s96, %s97
      %p111 = scmp.eq.s32.totalorder %s21, 1
      %p112 = por %p110, %p111
      %p114 = scmp.ne.s32.totalorder %s97, %s113
      %p115 = scmp.eq.s32.totalorder %s21, 0
      %p116 = por %p114, %p115
      %p117 = scmp.le.s32.totalorder 1, %s15
      %p118 = scmp.lt.s32.totalorder %s15, 3
      %p119 = pnand %p117, %p118
      %p120 = pneg %p119
      // Predicated region
      $region9: #{tpu_custom_call.1} parent=5 // pred_check
        _
      $region10: #{tpu_custom_call.1} parent=5 // pred_check_branch
        %122 = sbr.rel (%p119) target = $region12
      $region11: #{tpu_custom_call.1} parent=5 // pred_region
        %s123 = ssub.s32 %s15, 1
        // Predicated region
        $region13: #{tpu_custom_call.1} parent=11 // pred_check
          %p124 = pneg %p62
        $region14: #{tpu_custom_call.1} parent=11 // pred_check_branch
          %126 = sbr.rel (%p124) target = $region16
        $region15: #{tpu_custom_call.1} parent=11 // pred_region
          _
        $region16: #{tpu_custom_call.1} parent=11 // pred_fallthru
          _
        // Predicated region
        $region17: #{tpu_custom_call.1} parent=11 // pred_check
          %p127 = pneg %p83
        $region18: #{tpu_custom_call.1} parent=11 // pred_check_branch
          %129 = sbr.rel (%p127) target = $region20
        $region19: #{tpu_custom_call.1} parent=11 // pred_region
          _
        $region20: #{tpu_custom_call.1} parent=11 // pred_fallthru
          _
      $region12: #{tpu_custom_call.1} parent=5 // pred_fallthru
        _
      %p130 = scmp.lt.s32.totalorder %s15, 2
      // Predicated region
      $region21: #{tpu_custom_call.1} parent=5 // pred_check
        %p131 = pneg %p130
      $region22: #{tpu_custom_call.1} parent=5 // pred_check_branch
        %133 = sbr.rel (%p131) target = $region24
      $region23: #{tpu_custom_call.1} parent=5 // pred_region
        // Predicated region
        $region25: #{tpu_custom_call.1} parent=23 // pred_check
          %p134 = pneg %p35
        $region26: #{tpu_custom_call.1} parent=23 // pred_check_branch
          %136 = sbr.rel (%p134) target = $region28
        $region27: #{tpu_custom_call.1} parent=23 // pred_region
          %s137 = sand.u32 %s25, 1
          %s138 = scalar_lea.sflag [#allocation3], %s137
          %s139 = sand.u32 %s25, 1
          %s140 = smul.addr %s139, 64
          %s141 = scalar_lea.vmem [#allocation2], %s140
          %s142 = smul.u32 4, %s15
          %144 = vsyncadd %s138, 0
          %s145 = smul.addr %s142, 2
          %s146 = smul.addr %s145, 8
          %s147 = scalar_lea.hbm %s0, %s146
          %s148 = sshll.u32 %s147, 4
          %s149 = int_to_ptr.hbm [resolvable:$true] %s148
          %s150 = sshll.u32 %s141, 4
          %s151 = int_to_ptr.vmem [resolvable:$true] %s150
          %156 = dma.hbm_to_vmem [thread:$0]  %s149, 1024, %s151, %s138, 128, 128, 8
        $region28: #{tpu_custom_call.1} parent=23 // pred_fallthru
          _
      $region24: #{tpu_custom_call.1} parent=5 // pred_fallthru
        _
      %p157 = scmp.le.s32.totalorder 1, %s15
      %p158 = scmp.lt.s32.totalorder %s15, 3
      %p159 = pnand %p157, %p158
      %p160 = pneg %p159
      // Predicated region
      $region29: #{tpu_custom_call.1} parent=5 // pred_check
        _
      $region30: #{tpu_custom_call.1} parent=5 // pred_check_branch
        %162 = sbr.rel (%p159) target = $region32
      $region31: #{tpu_custom_call.1} parent=5 // pred_region
        %s163 = ssub.s32 %s15, 1
        %s164 = sand.u32 %s28, 1
        %s165 = scalar_lea.sflag [#allocation3], %s164
        %s166 = sand.u32 %s28, 1
        %s167 = smul.addr %s166, 64
        %s168 = scalar_lea.vmem [#allocation2], %s167
        // Predicated region
        $region33: #{tpu_custom_call.1} parent=31 // pred_check
          %p169 = pneg %p41
        $region34: #{tpu_custom_call.1} parent=31 // pred_check_branch
          %171 = sbr.rel (%p169) target = $region36
        $region35: #{tpu_custom_call.1} parent=31 // pred_region
          %173 = dma.done %s165, 1024
        $region36: #{tpu_custom_call.1} parent=31 // pred_fallthru
          _
        %s174 = sand.u32 %s28, 1
        %s175 = scalar_lea.sflag [#allocation3], %s174
        %s176 = sand.u32 %s28, 1
        %s177 = smul.addr %s176, 64
        %s178 = scalar_lea.vmem [#allocation2], %s177
        %p179 = pneg %p41
        %p180 = pneg %p38
        %p181 = pneg %p62
        %p182 = pneg %p59
        %p183 = pneg %p83
        %p184 = pneg %p80
        %p185 = pneg %p109
        %p186 = pneg %p106
        %s187 = sand.u32 %s96, 1
        %s188 = scalar_lea.sflag [#allocation4], %s187
        %s189 = sand.u32 %s96, 1
        %s190 = smul.addr %s189, 32
        %s191 = scalar_lea.vmem [#allocation5], %s190
        %s192 = smul.u32 4, %s20
        %v193 = vld [vmem:[%s168] sm:$0xff]
        %v194 = vld [vmem:[%s168 + $0x8] sm:$0xff]
        %v195 = vld [vmem:[%s168 + $0x10] sm:$0xff]
        %v196 = vld [vmem:[%s168 + $0x18] sm:$0xff]
        %v197 = vld [vmem:[%s168 + $0x20] sm:$0xff]
        %v198 = vld [vmem:[%s168 + $0x28] sm:$0xff]
        %v199 = vld [vmem:[%s168 + $0x30] sm:$0xff]
        %v200 = vld [vmem:[%s168 + $0x38] sm:$0xff]
        %v201 = vld [vmem:[%s2] sm:$0xff]
        %v202 = vld [vmem:[%s2 + $0x8] sm:$0xff]
        %vm203 = vcmask 130048
        %v205 = vsel %vm203, %v193, 0
        %v208 = vsel %vm203, %v194, 0
        %v211 = vsel %vm203, %v195, 0
        %v214 = vsel %vm203, %v196, 0
        %v217 = vsel %vm203, %v197, 0
        %v220 = vsel %vm203, %v198, 0
        %v223 = vsel %vm203, %v199, 0
        %v226 = vsel %vm203, %v200, 0
        %228 = vmatpush.msra.mxu0 0.0
        %229 = vmatpush.msra.mxu0 0.0
        %230 = vmatpush.msra.mxu0 0.0
        %231 = vmatpush.msra.mxu0 0.0
        %232 = vmatpush.msra.mxu0 0.0
        %233 = vmatpush.msra.mxu0 0.0
        %234 = vmatpush.msra.mxu0 0.0
        %235 = vmatpush.msra.mxu0 0.0
        %236 = vmatpush.msra.mxu0 0.0
        %237 = vmatpush.msra.mxu0 0.0
        %238 = vmatpush.msra.mxu0 0.0
        %239 = vmatpush.msra.mxu0 0.0
        %240 = vmatpush.msra.mxu0 0.0
        %241 = vmatpush.msra.mxu0 0.0
        %242 = vmatpush.msra.mxu0 %v202
        %243 = vmatpush.msra.mxu0 %v201
        %244 = vmatmul.f32.gmra.mxu0 %v205
        %v245 = vpop.f32.mrf.mxu0
        %v246 = vadd.f32 0.0, %v245
        %247 = vmatmul.f32.gmra.mxu0 %v208
        %v248 = vpop.f32.mrf.mxu0
        %v249 = vadd.f32 0.0, %v248
        %250 = vmatmul.f32.gmra.mxu0 %v211
        %v251 = vpop.f32.mrf.mxu0
        %v252 = vadd.f32 0.0, %v251
        %253 = vmatmul.f32.gmra.mxu0 %v214
        %v254 = vpop.f32.mrf.mxu0
        %v255 = vadd.f32 0.0, %v254
        %256 = vmatmul.f32.gmra.mxu0 %v217
        %v257 = vpop.f32.mrf.mxu0
        %v258 = vadd.f32 0.0, %v257
        %259 = vmatmul.f32.gmra.mxu0 %v220
        %v260 = vpop.f32.mrf.mxu0
        %v261 = vadd.f32 0.0, %v260
        %262 = vmatmul.f32.gmra.mxu0 %v223
        %v263 = vpop.f32.mrf.mxu0
        %v264 = vadd.f32 0.0, %v263
        %265 = vmatmul.f32.gmra.mxu0 %v226
        %v266 = vpop.f32.mrf.mxu0
        %v267 = vadd.f32 0.0, %v266
        %268 = vdwg.mxu0
        %v269 = vrot.slane %v258, 4
        %vm270 = vcmask 1047556
        %v271 = vsel %vm270, %v269, %v246
        %v272 = vrot.slane %v246, 4
        %v273 = vsel %vm270, %v258, %v272
        %v275 = vunpack.c.l.s4 1983009808
        %v276 = vunpack.c.0.s8 %v275
        %v277 = vperm.slane %v271, %v276
        %v279 = vunpack.c.l.s4 1983009808
        %v280 = vunpack.c.0.s8 %v279
        %v281 = vperm.slane %v273, %v280
        %v282 = vrot.slane %v264, 4
        %v283 = vsel %vm270, %v282, %v252
        %v284 = vrot.slane %v252, 4
        %v285 = vsel %vm270, %v264, %v284
        %v287 = vunpack.c.l.s4 1983009808
        %v288 = vunpack.c.0.s8 %v287
        %v289 = vperm.slane %v283, %v288
        %v291 = vunpack.c.l.s4 1983009808
        %v292 = vunpack.c.0.s8 %v291
        %v293 = vperm.slane %v285, %v292
        %v294 = vrot.slane %v289, 4
        %v295 = vsel %vm270, %v294, %v277
        %v296 = vrot.slane %v277, 4
        %v297 = vsel %vm270, %v289, %v296
        %v299 = vunpack.c.l.s4 1934713408
        %v300 = vunpack.c.0.s8 %v299
        %v301 = vperm.slane %v295, %v300
        %v303 = vunpack.c.l.s4 1934713408
        %v304 = vunpack.c.0.s8 %v303
        %v305 = vperm.slane %v297, %v304
        %v306 = vrot.slane %v293, 4
        %v307 = vsel %vm270, %v306, %v281
        %v308 = vrot.slane %v281, 4
        %v309 = vsel %vm270, %v293, %v308
        %v311 = vunpack.c.l.s4 1934713408
        %v312 = vunpack.c.0.s8 %v311
        %v313 = vperm.slane %v307, %v312
        %v315 = vunpack.c.l.s4 1934713408
        %v316 = vunpack.c.0.s8 %v315
        %v317 = vperm.slane %v309, %v316
        %v318 = vrot.slane %v301, 4
        %v319 = vsel %vm270, 0.0, %v318
        %v320 = vrot.slane %v305, 4
        %v321 = vsel %vm270, 0.0, %v320
        %v322 = vrot.slane %v313, 4
        %v323 = vsel %vm270, 0.0, %v322
        %v324 = vrot.slane %v317, 4
        %v325 = vsel %vm270, 0.0, %v324
        %v326 = vrot.slane %v261, 4
        %v327 = vsel %vm270, %v326, %v249
        %v328 = vrot.slane %v249, 4
        %v329 = vsel %vm270, %v261, %v328
        %v331 = vunpack.c.l.s4 1983009808
        %v332 = vunpack.c.0.s8 %v331
        %v333 = vperm.slane %v327, %v332
        %v335 = vunpack.c.l.s4 1983009808
        %v336 = vunpack.c.0.s8 %v335
        %v337 = vperm.slane %v329, %v336
        %v338 = vrot.slane %v267, 4
        %v339 = vsel %vm270, %v338, %v255
        %v340 = vrot.slane %v255, 4
        %v341 = vsel %vm270, %v267, %v340
        %v343 = vunpack.c.l.s4 1983009808
        %v344 = vunpack.c.0.s8 %v343
        %v345 = vperm.slane %v339, %v344
        %v347 = vunpack.c.l.s4 1983009808
        %v348 = vunpack.c.0.s8 %v347
        %v349 = vperm.slane %v341, %v348
        %v350 = vrot.slane %v345, 4
        %v351 = vsel %vm270, %v350, %v333
        %v352 = vrot.slane %v333, 4
        %v353 = vsel %vm270, %v345, %v352
        %v355 = vunpack.c.l.s4 1934713408
        %v356 = vunpack.c.0.s8 %v355
        %v357 = vperm.slane %v351, %v356
        %v359 = vunpack.c.l.s4 1934713408
        %v360 = vunpack.c.0.s8 %v359
        %v361 = vperm.slane %v353, %v360
        %v362 = vrot.slane %v349, 4
        %v363 = vsel %vm270, %v362, %v337
        %v364 = vrot.slane %v337, 4
        %v365 = vsel %vm270, %v349, %v364
        %v367 = vunpack.c.l.s4 1934713408
        %v368 = vunpack.c.0.s8 %v367
        %v369 = vperm.slane %v363, %v368
        %v371 = vunpack.c.l.s4 1934713408
        %v372 = vunpack.c.0.s8 %v371
        %v373 = vperm.slane %v365, %v372
        %v374 = vrot.slane %v357, 4
        %v375 = vsel %vm270, 0.0, %v374
        %v376 = vrot.slane %v361, 4
        %v377 = vsel %vm270, 0.0, %v376
        %v378 = vrot.slane %v369, 4
        %v379 = vsel %vm270, 0.0, %v378
        %v380 = vrot.slane %v373, 4
        %v381 = vsel %vm270, 0.0, %v380
        %v382 = vsel %vm270, %v320, %v301
        %v384 = vunpack.c.l.s4 1983009808
        %v385 = vunpack.c.0.s8 %v384
        %v386 = vperm.slane %v382, %v385
        %v387 = vrot.slane %v321, 4
        %v388 = vsel %vm270, %v387, %v319
        %v390 = vunpack.c.l.s4 1983009808
        %v391 = vunpack.c.0.s8 %v390
        %v392 = vperm.slane %v388, %v391
        %v393 = vsel %vm270, %v324, %v313
        %v395 = vunpack.c.l.s4 1983009808
        %v396 = vunpack.c.0.s8 %v395
        %v397 = vperm.slane %v393, %v396
        %v398 = vrot.slane %v325, 4
        %v399 = vsel %vm270, %v398, %v323
        %v401 = vunpack.c.l.s4 1983009808
        %v402 = vunpack.c.0.s8 %v401
        %v403 = vperm.slane %v399, %v402
        %v404 = vrot.slane %v392, 4
        %v405 = vsel %vm270, %v404, %v386
        %v406 = vrot.slane %v386, 4
        %v407 = vsel %vm270, %v392, %v406
        %v409 = vunpack.c.l.s4 1934713408
        %v410 = vunpack.c.0.s8 %v409
        %v411 = vperm.slane %v405, %v410
        %v413 = vunpack.c.l.s4 1934713408
        %v414 = vunpack.c.0.s8 %v413
        %v415 = vperm.slane %v407, %v414
        %v416 = vrot.slane %v403, 4
        %v417 = vsel %vm270, %v416, %v397
        %v418 = vrot.slane %v397, 4
        %v419 = vsel %vm270, %v403, %v418
        %v421 = vunpack.c.l.s4 1934713408
        %v422 = vunpack.c.0.s8 %v421
        %v423 = vperm.slane %v417, %v422
        %v425 = vunpack.c.l.s4 1934713408
        %v426 = vunpack.c.0.s8 %v425
        %v427 = vperm.slane %v419, %v426
        %v428 = vrot.slane %v423, 4
        %v429 = vsel %vm270, %v428, %v411
        %v430 = vrot.slane %v411, 4
        %v431 = vsel %vm270, %v423, %v430
        %v432 = vrot.slane %v427, 4
        %v433 = vsel %vm270, %v432, %v415
        %v434 = vrot.slane %v415, 4
        %v435 = vsel %vm270, %v427, %v434
        %v436 = vsel %vm270, %v376, %v357
        %v438 = vunpack.c.l.s4 1983009808
        %v439 = vunpack.c.0.s8 %v438
        %v440 = vperm.slane %v436, %v439
        %v441 = vrot.slane %v377, 4
        %v442 = vsel %vm270, %v441, %v375
        %v444 = vunpack.c.l.s4 1983009808
        %v445 = vunpack.c.0.s8 %v444
        %v446 = vperm.slane %v442, %v445
        %v447 = vsel %vm270, %v380, %v369
        %v449 = vunpack.c.l.s4 1983009808
        %v450 = vunpack.c.0.s8 %v449
        %v451 = vperm.slane %v447, %v450
        %v452 = vrot.slane %v381, 4
        %v453 = vsel %vm270, %v452, %v379
        %v455 = vunpack.c.l.s4 1983009808
        %v456 = vunpack.c.0.s8 %v455
        %v457 = vperm.slane %v453, %v456
        %v458 = vrot.slane %v446, 4
        %v459 = vsel %vm270, %v458, %v440
        %v460 = vrot.slane %v440, 4
        %v461 = vsel %vm270, %v446, %v460
        %v463 = vunpack.c.l.s4 1934713408
        %v464 = vunpack.c.0.s8 %v463
        %v465 = vperm.slane %v459, %v464
        %v467 = vunpack.c.l.s4 1934713408
        %v468 = vunpack.c.0.s8 %v467
        %v469 = vperm.slane %v461, %v468
        %v470 = vrot.slane %v457, 4
        %v471 = vsel %vm270, %v470, %v451
        %v472 = vrot.slane %v451, 4
        %v473 = vsel %vm270, %v457, %v472
        %v475 = vunpack.c.l.s4 1934713408
        %v476 = vunpack.c.0.s8 %v475
        %v477 = vperm.slane %v471, %v476
        %v479 = vunpack.c.l.s4 1934713408
        %v480 = vunpack.c.0.s8 %v479
        %v481 = vperm.slane %v473, %v480
        %v482 = vrot.slane %v477, 4
        %v483 = vsel %vm270, %v482, %v465
        %v484 = vrot.slane %v465, 4
        %v485 = vsel %vm270, %v477, %v484
        %v486 = vrot.slane %v481, 4
        %v487 = vsel %vm270, %v486, %v469
        %v488 = vrot.slane %v469, 4
        %v489 = vsel %vm270, %v481, %v488
        %492 = vrot.lane.b32.xlu0 %v431, 32
        %v493 = vpop.permute.xlu0 %492
        %494 = vrot.lane.b32.xlu0 %v485, 32
        %v495 = vpop.permute.xlu0 %494
        %500 = vrot.lane.b32.xlu0 %v433, 64
        %v501 = vpop.permute.xlu0 %500
        %502 = vrot.lane.b32.xlu0 %v487, 64
        %v503 = vpop.permute.xlu0 %502
        %508 = vrot.lane.b32.xlu0 %v435, 96
        %v509 = vpop.permute.xlu0 %508
        %510 = vrot.lane.b32.xlu0 %v489, 96
        %v511 = vpop.permute.xlu0 %510
        %vm514 = vcmask 261120
        %v515 = vsel %vm514, %v429, %v493
        %v516 = vsel %vm514, %v483, %v495
        %vm517 = vcmask 523264
        %v518 = vsel %vm517, %v515, %v501
        %v519 = vsel %vm517, %v516, %v503
        %vm520 = vcmask 785408
        %v521 = vsel %vm520, %v518, %v509
        %v522 = vsel %vm520, %v519, %v511
        %v523 = vld [vmem:[%s1] sm:$0xff]
        %v524 = vld [vmem:[%s1 + $0x8] sm:$0xff]
        %v525 = vld [vmem:[%s1 + $0x10] sm:$0xff]
        %v526 = vld [vmem:[%s1 + $0x18] sm:$0xff]
        %v528 = vsel %vm203, %v523, 0
        %v531 = vsel %vm203, %v524, 0
        %v534 = vsel %vm203, %v525, 0
        %v537 = vsel %vm203, %v526, 0
        %539 = vmatpush.msra.mxu0 0.0
        %540 = vmatpush.msra.mxu0 0.0
        %541 = vmatpush.msra.mxu0 0.0
        %542 = vmatpush.msra.mxu0 0.0
        %543 = vmatpush.msra.mxu0 0.0
        %544 = vmatpush.msra.mxu0 0.0
        %545 = vmatpush.msra.mxu0 0.0
        %546 = vmatpush.msra.mxu0 0.0
        %547 = vmatpush.msra.mxu0 0.0
        %548 = vmatpush.msra.mxu0 0.0
        %549 = vmatpush.msra.mxu0 0.0
        %550 = vmatpush.msra.mxu0 0.0
        %551 = vmatpush.msra.mxu0 0.0
        %552 = vmatpush.msra.mxu0 0.0
        %553 = vmatpush.msra.mxu0 %v522
        %554 = vmatpush.msra.mxu0 %v521
        %555 = vmatmul.f32.gmra.mxu0 %v528
        %v556 = vpop.f32.mrf.mxu0
        %v557 = vadd.f32 0.0, %v556
        %558 = vmatmul.f32.gmra.mxu0 %v531
        %v559 = vpop.f32.mrf.mxu0
        %v560 = vadd.f32 0.0, %v559
        %561 = vmatmul.f32.gmra.mxu0 %v534
        %v562 = vpop.f32.mrf.mxu0
        %v563 = vadd.f32 0.0, %v562
        %564 = vmatmul.f32.gmra.mxu0 %v537
        %v565 = vpop.f32.mrf.mxu0
        %v566 = vadd.f32 0.0, %v565
        %567 = vdwg.mxu0
        %568 = vst [vmem:[%s191] sm:$0xff] %v557
        %569 = vst [vmem:[%s191 + $0x8] sm:$0xff] %v560
        %570 = vst [vmem:[%s191 + $0x10] sm:$0xff] %v563
        %571 = vst [vmem:[%s191 + $0x18] sm:$0xff] %v566
        %s572 = sand.u32 %s96, 1
        %s573 = scalar_lea.sflag [#allocation4], %s572
        %s574 = sand.u32 %s96, 1
        %s575 = smul.addr %s574, 32
        %s576 = scalar_lea.vmem [#allocation5], %s575
        // Predicated region
        $region37: #{tpu_custom_call.1} parent=31 // pred_check
          %p577 = pneg %p106
        $region38: #{tpu_custom_call.1} parent=31 // pred_check_branch
          %579 = sbr.rel (%p577) target = $region40
        $region39: #{tpu_custom_call.1} parent=31 // pred_region
          %581 = vsyncadd %s573, 0
          %s582 = smul.addr %s20, 4
          %s583 = smul.addr %s582, 8
          %s584 = scalar_lea.hbm %s3, %s583
          %s585 = sshll.u32 %s576, 4
          %s586 = int_to_ptr.vmem [resolvable:$true] %s585
          %s587 = sshll.u32 %s584, 4
          %s588 = int_to_ptr.hbm [resolvable:$true] %s587
          %593 = dma.vmem_to_hbm [thread:$0]  %s586, 512, %s588, %s573, 128, 128, 8
        $region40: #{tpu_custom_call.1} parent=31 // pred_fallthru
          _
      $region32: #{tpu_custom_call.1} parent=5 // pred_fallthru
        _
      %p594 = scmp.le.s32.totalorder 2, %s15
      // Predicated region
      $region41: #{tpu_custom_call.1} parent=5 // pred_check
        %p595 = pneg %p594
      $region42: #{tpu_custom_call.1} parent=5 // pred_check_branch
        %597 = sbr.rel (%p595) target = $region44
      $region43: #{tpu_custom_call.1} parent=5 // pred_region
        %s598 = ssub.s32 %s15, 2
        // Predicated region
        $region45: #{tpu_custom_call.1} parent=43 // pred_check
          %p599 = pneg %p112
        $region46: #{tpu_custom_call.1} parent=43 // pred_check_branch
          %601 = sbr.rel (%p599) target = $region48
        $region47: #{tpu_custom_call.1} parent=43 // pred_region
          %s602 = sand.u32 %s97, 1
          %s603 = scalar_lea.sflag [#allocation4], %s602
          %s604 = sand.u32 %s97, 1
          %s605 = smul.addr %s604, 32
          %s606 = scalar_lea.vmem [#allocation5], %s605
          %608 = dma.done %s603, 512
        $region48: #{tpu_custom_call.1} parent=43 // pred_fallthru
          _
      $region44: #{tpu_custom_call.1} parent=5 // pred_fallthru
        _
    $region6: #{tpu_custom_call.1} parent=1 // loop_footer
      %s19 = sadd.s32 1, %s15
    $region7: #{tpu_custom_call.1} parent=1 // loop_footer_branch
      %14 = sbr.rel target = $region3
    $region8: #{tpu_custom_call.1} parent=1 // loop_exit
      _
    %609 = vsyncpa [#allocation3], 1
    %s610 = scalar_lea.sflag [#allocation3], 1
    %611 = vsyncpa %s610, 1
    %612 = vsyncpa [#allocation4], 1
    %s613 = scalar_lea.sflag [#allocation4], 1
    %614 = vsyncpa %s613, 1

</llo_original>
